<compile_context>
chip_gen: v5e
topology: v5e:2x2
jax: 0.10.0
libtpu: 0.0.40
codegen_flags: <defaults>
</compile_context>

<pallas_src>
import math

import jax
import jax.numpy as jnp
from jax.experimental import pallas as pl
from jax.experimental.pallas import tpu as pltpu


_VMEM_LIMIT = 32 * 1024 * 1024  # portable scoped-VMEM limit (v5e default is 16 MiB)


# -----------------------------------------------------------------------------
# Forward kernel: fused Linear -> ReLU -> Linear (the wrapped module's forward).
# bf16 operands on the MXU, f32 accumulation, f32 epilogue (bias + ReLU).
# -----------------------------------------------------------------------------
def _mlp_fwd_kernel(x_ref, w1_ref, b1_ref, w2_ref, b2_ref, o_ref):
    x = x_ref[...]                                                   # [TB, D_in]
    h = jnp.dot(x, w1_ref[...], preferred_element_type=jnp.float32)  # MXU, f32 acc
    h = h + b1_ref[...].astype(jnp.float32)
    h = jnp.maximum(h, 0.0)                                          # ReLU in f32
    h = h.astype(w2_ref.dtype)                                       # bf16 for MXU
    y = jnp.dot(h, w2_ref[...], preferred_element_type=jnp.float32)
    y = y + b2_ref[...].astype(jnp.float32)
    o_ref[...] = y.astype(o_ref.dtype)


def ddp_forward(x, params, *, tile_b=256):
    """DDPBucketed.forward(x) == wrapped MLP forward, as a gridded Pallas kernel.

    tile_b=256 fills the 2x256^2 MXU of v6e/v7x; use tile_b=128 on v5e (4x128^2).
    """
    w1, b1, w2, b2 = params
    B, d_in = x.shape
    d_hid = w1.shape[1]
    d_out = w2.shape[1]
    assert B % tile_b == 0, "batch must be a multiple of the batch tile"
    assert d_in % 128 == 0 and d_hid % 128 == 0 and d_out % 128 == 0, \
        "feature dims must be multiples of 128 (lane-dense)"

    flops = 2 * B * (d_in * d_hid + d_hid * d_out)
    bytes_accessed = int(
        x.size * x.dtype.itemsize
        + sum(p.size * p.dtype.itemsize for p in params)
        + B * d_out * x.dtype.itemsize
    )

    # NOTE: the weight/bias blocks use a constant index_map and never change
    # across the grid; at these sizes their default double-buffering is cheap.
    # TODO(synk): for large d_in/d_hid, add a K-axis ("arbitrary") grid with an
    # f32 accumulator (or pipeline_mode=pl.Buffered(1) on the weight specs)
    # instead of pinning whole weights, to preserve tile_b=256 within v7x VMEM.
    return pl.pallas_call(
        _mlp_fwd_kernel,
        out_shape=jax.ShapeDtypeStruct((B, d_out), x.dtype),
        grid_spec=pltpu.PrefetchScalarGridSpec(
            num_scalar_prefetch=0,
            grid=(B // tile_b,),
            in_specs=[
                pl.BlockSpec((tile_b, d_in), lambda i: (i, 0)),   # x: tiled over batch
                pl.BlockSpec((d_in, d_hid), lambda i: (0, 0)),    # w1: VMEM-resident
                pl.BlockSpec((1, d_hid), lambda i: (0, 0)),       # b1
                pl.BlockSpec((d_hid, d_out), lambda i: (0, 0)),   # w2
                pl.BlockSpec((1, d_out), lambda i: (0, 0)),       # b2
            ],
            out_specs=pl.BlockSpec((tile_b, d_out), lambda i: (i, 0)),
        ),
        compiler_params=pltpu.CompilerParams(
            dimension_semantics=("parallel",),                     # megacore on v7x
            vmem_limit_bytes=_VMEM_LIMIT),
        cost_estimate=pl.CostEstimate(
            flops=flops, transcendentals=0, bytes_accessed=bytes_accessed),
    )(x, w1, b1, w2, b2)


# -----------------------------------------------------------------------------
# Bucketed gradient synchronization:
#   flat_grad /= world_size ; all_reduce(SUM)  ==  mean over the replica axis.
#
# One Pallas call per bucket.  Each parameter's stacked replica grad
# [world, *shape] is a separate input; each synchronized f32 grad [*shape] is a
# separate output.  The grid iterates the world axis ("arbitrary"); output
# blocks use a constant index_map, so they stay resident in VMEM and serve as
# the f32 accumulators (init at w == 0, single HBM writeback at the end).
# No flatten / pad / unflatten copies ever touch HBM.
# -----------------------------------------------------------------------------
def finish_gradient_synchronization(bucket_grads):
    """Sync one bucket of gradients.

    bucket_grads: list of per-parameter stacked replica grads, each [world, *shape].
    Returns: list of synchronized f32 grads (mean over replicas), one per param.
    """
    world = bucket_grads[0].shape[0]
    num_params = len(bucket_grads)
    inv_world = 1.0 / world

    def kernel(*refs):
        g_refs = refs[:num_params]
        o_refs = refs[num_params:]
        w = pl.program_id(0)

        @pl.when(w == 0)
        def _init():
            for o_ref in o_refs:
                o_ref[...] = jnp.zeros_like(o_ref)

        for g_ref, o_ref in zip(g_refs, o_refs):
            # One replica's slice of this parameter's grad; accumulate in f32.
            o_ref[...] += g_ref[0].astype(jnp.float32) * inv_world

    in_specs = []
    out_specs = []
    out_shapes = []
    total_elems = 0
    for g in bucket_grads:
        pshape = tuple(g.shape[1:])
        total_elems += math.prod(pshape)
        nd = len(pshape)
        # Input block: one replica's full grad slice (trailing dims = full array
        # dims, so the (8,128) block constraint is always satisfied).
        in_specs.append(pl.BlockSpec(
            (1,) + pshape, (lambda w_, _nd=nd: (w_,) + (0,) * _nd)))
        # Output block: whole param, constant index -> resident accumulator.
        out_specs.append(pl.BlockSpec(
            pshape, (lambda w_, _nd=nd: (0,) * _nd)))
        out_shapes.append(jax.ShapeDtypeStruct(pshape, jnp.float32))

    in_itemsize = bucket_grads[0].dtype.itemsize
    synced = pl.pallas_call(
        kernel,
        out_shape=tuple(out_shapes),
        grid_spec=pltpu.PrefetchScalarGridSpec(
            num_scalar_prefetch=0,
            grid=(world,),
            in_specs=in_specs,
            out_specs=tuple(out_specs),
        ),
        compiler_params=pltpu.CompilerParams(
            dimension_semantics=("arbitrary",),       # reduction axis, resident output
            vmem_limit_bytes=_VMEM_LIMIT),
        cost_estimate=pl.CostEstimate(
            flops=int((2 * world - 1) * total_elems),  # adds + scale
            transcendentals=0,
            bytes_accessed=int(world * total_elems * in_itemsize
                               + total_elems * 4)),
    )(*bucket_grads)
    # TODO(synk): true multi-chip DDP would replace the stacked world axis with a
    # ring reduce-scatter/all-gather via pltpu.make_async_remote_copy + per-slot
    # DMA semaphores + pltpu.get_barrier_semaphore() (collective_id set),
    # overlapping one ring step per backward grid iteration.
    return list(synced)


# -----------------------------------------------------------------------------
# Deterministic parameter init (models dist.broadcast(param, 0): every "rank"
# sees identical parameters).  PyTorch Linear stores W as (out, in); we
# pre-transpose to (in, out) so the kernel does plain x @ W.
# -----------------------------------------------------------------------------
def init_params(key, d_in, d_hidden, d_out, dtype=jnp.bfloat16):
    k1, k2, k3, k4 = jax.random.split(key, 4)
    w1 = (jax.random.normal(k1, (d_hidden, d_in), jnp.float32) * 0.02).T.astype(dtype)
    b1 = (jax.random.normal(k2, (1, d_hidden), jnp.float32) * 0.02).astype(dtype)
    w2 = (jax.random.normal(k3, (d_out, d_hidden), jnp.float32) * 0.02).T.astype(dtype)
    b2 = (jax.random.normal(k4, (1, d_out), jnp.float32) * 0.02).astype(dtype)
    return w1, b1, w2, b2


if __name__ == "__main__":
    key = jax.random.PRNGKey(0)
    kx, kp, kg = jax.random.split(key, 3)

    # Lane-dense (multiples of 128) shapes; batch sized so the forward grid has
    # 8 steps (>= 4 pipelined steps per TensorCore on v7x) with tile_b=256.
    B, D_IN, D_HID, D_OUT = 2048, 128, 256, 128
    TILE_B = 256          # MXU-native on v6e/v7x; use 128 on v5e
    WORLD = 4
    DTYPE = jnp.bfloat16

    params = init_params(kp, D_IN, D_HID, D_OUT, DTYPE)
    x = jax.random.normal(kx, (B, D_IN), jnp.float32).astype(DTYPE)

    # --- Forward pass (DDPBucketed.forward == wrapped module forward) ---------
    y = ddp_forward(x, params, tile_b=TILE_B)
    y = jax.block_until_ready(y)

    # Reference in f32 with the same bf16-cast intermediate the kernel uses.
    w1f, b1f, w2f, b2f = (p.astype(jnp.float32) for p in params)
    xf = x.astype(jnp.float32)
    h_ref = jnp.maximum(xf @ w1f + b1f, 0.0).astype(DTYPE).astype(jnp.float32)
    y_ref = h_ref @ w2f + b2f
    assert jnp.allclose(y.astype(jnp.float32), y_ref, atol=2e-2, rtol=2e-2), \
        "forward mismatch"

    # --- Gradient synchronization: one bucket holding all 4 param grads -------
    grad_keys = jax.random.split(kg, len(params))
    bucket_grads = [
        jax.random.normal(k, (WORLD,) + p.shape, jnp.float32).astype(DTYPE)
        for k, p in zip(grad_keys, params)
    ]
    synced = finish_gradient_synchronization(bucket_grads)
    synced = jax.block_until_ready(synced)
    for g, s in zip(bucket_grads, synced):
        ref = jnp.mean(g.astype(jnp.float32), axis=0)
        assert s.dtype == jnp.float32
        assert jnp.allclose(s, ref, atol=1e-5, rtol=1e-5), "grad sync mismatch"

    print("KERNEL_OK")
</pallas_src>

<mosaic_0001>
module attributes {stable_mosaic.version = 11 : i64} {
  func.func @_mlp_fwd_kernel(%arg0: i32, %arg1: memref<256x128xbf16, #tpu.memory_space<vmem>>, %arg2: memref<128x256xbf16, #tpu.memory_space<vmem>>, %arg3: memref<1x256xbf16, #tpu.memory_space<vmem>>, %arg4: memref<256x128xbf16, #tpu.memory_space<vmem>>, %arg5: memref<1x128xbf16, #tpu.memory_space<vmem>>, %arg6: memref<256x128xbf16, #tpu.memory_space<vmem>>) attributes {dimension_semantics = [#tpu.dimension_semantics<parallel>], iteration_bounds = array<i64: 8>, scalar_prefetch = 0 : i64, scratch_operands = 0 : i64, tpu.core_type = #tpu.core_type<tc>, window_params = [{transform_indices = @transform_0, window_bounds = array<i64: 256, 128>}, {pipeline_mode = #tpu.pipeline_mode<synchronous>, transform_indices = @transform_1, window_bounds = array<i64: 128, 256>}, {pipeline_mode = #tpu.pipeline_mode<synchronous>, transform_indices = @transform_2, window_bounds = array<i64: 1, 256>}, {pipeline_mode = #tpu.pipeline_mode<synchronous>, transform_indices = @transform_3, window_bounds = array<i64: 256, 128>}, {pipeline_mode = #tpu.pipeline_mode<synchronous>, transform_indices = @transform_4, window_bounds = array<i64: 1, 128>}, {transform_indices = @transform_5, window_bounds = array<i64: 256, 128>}]} {
    %c0 = arith.constant 0 : index
    %c0_0 = arith.constant 0 : index
    %0 = vector.load %arg1[%c0, %c0_0] : memref<256x128xbf16, #tpu.memory_space<vmem>>, vector<256x128xbf16>
    %c0_1 = arith.constant 0 : index
    %c0_2 = arith.constant 0 : index
    %1 = vector.load %arg2[%c0_1, %c0_2] : memref<128x256xbf16, #tpu.memory_space<vmem>>, vector<128x256xbf16>
    %cst = arith.constant dense<0.000000e+00> : vector<256x256xf32>
    %2 = tpu.matmul %0, %1, %cst {dimension_numbers = #tpu.dot_dimension_numbers<[1], [0], [0], [1], [0, 0, 1, 1], [], []>} : vector<256x128xbf16>, vector<128x256xbf16>, vector<256x256xf32> -> vector<256x256xf32>
    %c0_3 = arith.constant 0 : index
    %c0_4 = arith.constant 0 : index
    %3 = vector.load %arg3[%c0_3, %c0_4] : memref<1x256xbf16, #tpu.memory_space<vmem>>, vector<1x256xbf16>
    %4 = arith.extf %3 : vector<1x256xbf16> to vector<1x256xf32>
    %5 = vector.broadcast %4 : vector<1x256xf32> to vector<256x256xf32>
    %6 = arith.addf %2, %5 : vector<256x256xf32>
    %cst_5 = arith.constant 0.000000e+00 : f32
    %7 = vector.broadcast %cst_5 : f32 to vector<256x256xf32>
    %8 = arith.maximumf %6, %7 : vector<256x256xf32>
    %9 = arith.truncf %8 : vector<256x256xf32> to vector<256x256xbf16>
    %c0_6 = arith.constant 0 : index
    %c0_7 = arith.constant 0 : index
    %10 = vector.load %arg4[%c0_6, %c0_7] : memref<256x128xbf16, #tpu.memory_space<vmem>>, vector<256x128xbf16>
    %cst_8 = arith.constant dense<0.000000e+00> : vector<256x128xf32>
    %11 = tpu.matmul %9, %10, %cst_8 {dimension_numbers = #tpu.dot_dimension_numbers<[1], [0], [0], [1], [0, 0, 1, 1], [], []>} : vector<256x256xbf16>, vector<256x128xbf16>, vector<256x128xf32> -> vector<256x128xf32>
    %c0_9 = arith.constant 0 : index
    %c0_10 = arith.constant 0 : index
    %12 = vector.load %arg5[%c0_9, %c0_10] : memref<1x128xbf16, #tpu.memory_space<vmem>>, vector<1x128xbf16>
    %13 = arith.extf %12 : vector<1x128xbf16> to vector<1x128xf32>
    %14 = vector.broadcast %13 : vector<1x128xf32> to vector<256x128xf32>
    %15 = arith.addf %11, %14 : vector<256x128xf32>
    %16 = arith.truncf %15 : vector<256x128xf32> to vector<256x128xbf16>
    %c0_11 = arith.constant 0 : index
    %c0_12 = arith.constant 0 : index
    %17 = vector.load %arg6[%c0_11, %c0_12] : memref<256x128xbf16, #tpu.memory_space<vmem>>, vector<256x128xbf16>
    tpu.vector_store %arg6[%c0_11, %c0_12], %16 {strides = array<i32>} : memref<256x128xbf16, #tpu.memory_space<vmem>>, vector<256x128xbf16>,
    return
  }
  func.func @transform_0(%arg0: i32) -> (i32, i32) {
    %c0_i32 = arith.constant 0 : i32
    %c0_i32_0 = arith.constant 0 : i32
    return %arg0, %c0_i32 : i32, i32
  }
  func.func @transform_1(%arg0: i32) -> (i32, i32) {
    %c0_i32 = arith.constant 0 : i32
    %c0_i32_0 = arith.constant 0 : i32
    %c0_i32_1 = arith.constant 0 : i32
    return %c0_i32, %c0_i32_0 : i32, i32
  }
  func.func @transform_2(%arg0: i32) -> (i32, i32) {
    %c0_i32 = arith.constant 0 : i32
    %c0_i32_0 = arith.constant 0 : i32
    %c0_i32_1 = arith.constant 0 : i32
    return %c0_i32, %c0_i32_0 : i32, i32
  }
  func.func @transform_3(%arg0: i32) -> (i32, i32) {
    %c0_i32 = arith.constant 0 : i32
    %c0_i32_0 = arith.constant 0 : i32
    %c0_i32_1 = arith.constant 0 : i32
    return %c0_i32, %c0_i32_0 : i32, i32
  }
  func.func @transform_4(%arg0: i32) -> (i32, i32) {
    %c0_i32 = arith.constant 0 : i32
    %c0_i32_0 = arith.constant 0 : i32
    %c0_i32_1 = arith.constant 0 : i32
    return %c0_i32, %c0_i32_0 : i32, i32
  }
  func.func @transform_5(%arg0: i32) -> (i32, i32) {
    %c0_i32 = arith.constant 0 : i32
    %c0_i32_0 = arith.constant 0 : i32
    return %arg0, %c0_i32 : i32, i32
  }
}

</mosaic_0001>

<llo_original>
// kernel: tpu_custom_call.1
$region0: #{tpu_custom_call.1}
  #allocation0 [shape = 'u32[]', space=smem, size = 0x4, offset = 0x4, fixed_abs, tag = 'smem constant byte address 0x4 - core index']
  #allocation1 [shape = 'u32[72,128]{1,0:T(1,128)}', space=vmem, size = 0x9000, scoped, tag = 'internal scratch']
  %s0 = inlined_call_operand.hbm [shape: bf16[2048,128], index: 0, kind: input, shape index: {}]
  %s1 = inlined_call_operand.hbm [shape: bf16[128,256], index: 1, kind: input, shape index: {}]
  %s2 = inlined_call_operand.hbm [shape: bf16[1,256], index: 2, kind: input, shape index: {}]
  %s3 = inlined_call_operand.hbm [shape: bf16[256,128], index: 3, kind: input, shape index: {}]
  %s4 = inlined_call_operand.vmem [shape: bf16[1,128], index: 4, kind: input, shape index: {}]
  %s5 = inlined_call_operand.hbm [shape: bf16[2048,128], index: 5, kind: output, shape index: {}]
  %s6 = sld [smem:[#allocation0]]
  $region69: #{tpu_custom_call.1} parent=0
    _
  %s8 = ssub.s32 1, %s6
  %s9 = scalar_select 0, %s8, %s6
  $region1: #{tpu_custom_call.1} parent=0
    #allocation2 [shape = 'u8[131072]{0}', space=vmem, size = 0x20000, scoped, tag = 'input window, operand 0']
    #allocation3 [shape = 's32[2]{0}', space=sflag, size = 0x8, scoped, tag = 'scoped memory for tpu_custom_call.1']
    #allocation4 [shape = 's32[2]{0}', space=sflag, size = 0x8, scoped, tag = 'scoped memory for tpu_custom_call.1']
    #allocation5 [shape = 'u8[65536]{0}', space=vmem, size = 0x10000, scoped, tag = 'input window, operand 1, single buffered']
    #allocation6 [shape = 's32[1]{0}', space=sflag, size = 0x4, scoped, tag = 'scoped memory for tpu_custom_call.1']
    #allocation7 [shape = 'u8[1024]{0}', space=vmem, size = 0x400, scoped, tag = 'input window, operand 2, single buffered']
    #allocation8 [shape = 'u8[65536]{0}', space=vmem, size = 0x10000, scoped, tag = 'input window, operand 3, single buffered']
    #allocation9 [shape = 's32[1]{0}', space=sflag, size = 0x4, scoped, tag = 'scoped memory for tpu_custom_call.1']
    #allocation10 [shape = 'u8[131072]{0}', space=vmem, size = 0x20000, scoped, tag = 'output window, operand 0']
    %10 = vsyncpa [#allocation3], 0
    %s11 = scalar_lea.sflag [#allocation3], 1
    %12 = vsyncpa %s11, 0
    %13 = vsyncpa [#allocation6], 0
    %14 = vsyncpa [#allocation9], 0
    %15 = vsyncpa [#allocation4], 0
    %s16 = scalar_lea.sflag [#allocation4], 1
    %17 = vsyncpa %s16, 0
    loop: start=0, step=1, limit=10
    $region2: #{tpu_custom_call.1} parent=1 // loop_pre_header
      _
    $region3: #{tpu_custom_call.1} parent=1 // loop_header
      %s19 = sphi 0, %s23
      %p20 = scmp.ge.s32.totalorder %s19, 10
      %s29 = sphi 0, %s31
      %s32 = sphi 0, %s29
      %s33 = sphi 0, %s32
      %s49 = sphi 0, %s33
      %s53 = sphi 0, %s53
      %s55 = sphi 0, %s53
      %s56 = sphi 0, %s55
      %s70 = sphi 0, %s56
      %s74 = sphi 0, %s74
      %s76 = sphi 0, %s74
      %s77 = sphi 0, %s76
      %s91 = sphi 0, %s77
      %s95 = sphi 0, %s95
      %s97 = sphi 0, %s95
      %s98 = sphi 0, %s97
      %s112 = sphi 0, %s98
      %s116 = sphi 0, %s116
      %s118 = sphi 0, %s116
      %s119 = sphi 0, %s118
      %s133 = sphi 0, %s119
      %s139 = sphi 0, %s141
      %s142 = sphi 0, %s139
      %s143 = sphi 0, %s142
      %s159 = sphi 0, %s143
    $region4: #{tpu_custom_call.1} parent=1 // loop_header_branch
      %22 = sbr.rel (%p20) target = $region8
    $region5: #{tpu_custom_call.1} parent=1 // loop_body
      %s24 = ssub.s32 %s19, 1
      %s25 = ssub.s32 %s19, 2
      %s26 = sadd.s32 %s19, 1
      %s27 = ssub.s32 %s19, %s26
      %p28 = scmp.eq.s32.totalorder %s27, 0
      %s30 = sadd.s32 %s29, 1
      %s31 = scalar_select %p28, %s29, %s30
      %p34 = pneg %p28
      %p35 = scmp.eq.s32.totalorder %s19, 7
      %p36 = por %p34, %p35
      %p37 = scmp.ne.s32.totalorder %s29, %s32
      %p38 = scmp.eq.s32.totalorder %s19, 0
      %p39 = por %p37, %p38
      %p40 = scmp.ne.s32.totalorder %s29, %s32
      %p41 = scmp.eq.s32.totalorder %s24, 7
      %p42 = por %p40, %p41
      %p43 = scmp.ne.s32.totalorder %s32, %s33
      %p44 = scmp.eq.s32.totalorder %s24, 0
      %p45 = por %p43, %p44
      %p46 = scmp.ne.s32.totalorder %s32, %s33
      %p47 = scmp.eq.s32.totalorder %s25, 7
      %p48 = por %p46, %p47
      %p50 = scmp.ne.s32.totalorder %s33, %s49
      %p51 = scmp.eq.s32.totalorder %s25, 0
      %p52 = por %p50, %p51
      %s54 = sadd.s32 %s53, 1
      %p57 = scmp.eq.s32.totalorder %s19, 7
      %p58 = scmp.ne.s32.totalorder %s53, %s55
      %p59 = scmp.eq.s32.totalorder %s19, 0
      %p60 = por %p58, %p59
      %p61 = scmp.ne.s32.totalorder %s53, %s55
      %p62 = scmp.eq.s32.totalorder %s24, 7
      %p63 = por %p61, %p62
      %p64 = scmp.ne.s32.totalorder %s55, %s56
      %p65 = scmp.eq.s32.totalorder %s24, 0
      %p66 = por %p64, %p65
      %p67 = scmp.ne.s32.totalorder %s55, %s56
      %p68 = scmp.eq.s32.totalorder %s25, 7
      %p69 = por %p67, %p68
      %p71 = scmp.ne.s32.totalorder %s56, %s70
      %p72 = scmp.eq.s32.totalorder %s25, 0
      %p73 = por %p71, %p72
      %s75 = sadd.s32 %s74, 1
      %p78 = scmp.eq.s32.totalorder %s19, 7
      %p79 = scmp.ne.s32.totalorder %s74, %s76
      %p80 = scmp.eq.s32.totalorder %s19, 0
      %p81 = por %p79, %p80
      %p82 = scmp.ne.s32.totalorder %s74, %s76
      %p83 = scmp.eq.s32.totalorder %s24, 7
      %p84 = por %p82, %p83
      %p85 = scmp.ne.s32.totalorder %s76, %s77
      %p86 = scmp.eq.s32.totalorder %s24, 0
      %p87 = por %p85, %p86
      %p88 = scmp.ne.s32.totalorder %s76, %s77
      %p89 = scmp.eq.s32.totalorder %s25, 7
      %p90 = por %p88, %p89
      %p92 = scmp.ne.s32.totalorder %s77, %s91
      %p93 = scmp.eq.s32.totalorder %s25, 0
      %p94 = por %p92, %p93
      %s96 = sadd.s32 %s95, 1
      %p99 = scmp.eq.s32.totalorder %s19, 7
      %p100 = scmp.ne.s32.totalorder %s95, %s97
      %p101 = scmp.eq.s32.totalorder %s19, 0
      %p102 = por %p100, %p101
      %p103 = scmp.ne.s32.totalorder %s95, %s97
      %p104 = scmp.eq.s32.totalorder %s24, 7
      %p105 = por %p103, %p104
      %p106 = scmp.ne.s32.totalorder %s97, %s98
      %p107 = scmp.eq.s32.totalorder %s24, 0
      %p108 = por %p106, %p107
      %p109 = scmp.ne.s32.totalorder %s97, %s98
      %p110 = scmp.eq.s32.totalorder %s25, 7
      %p111 = por %p109, %p110
      %p113 = scmp.ne.s32.totalorder %s98, %s112
      %p114 = scmp.eq.s32.totalorder %s25, 0
      %p115 = por %p113, %p114
      %s117 = sadd.s32 %s116, 1
      %p120 = scmp.eq.s32.totalorder %s19, 7
      %p121 = scmp.ne.s32.totalorder %s116, %s118
      %p122 = scmp.eq.s32.totalorder %s19, 0
      %p123 = por %p121, %p122
      %p124 = scmp.ne.s32.totalorder %s116, %s118
      %p125 = scmp.eq.s32.totalorder %s24, 7
      %p126 = por %p124, %p125
      %p127 = scmp.ne.s32.totalorder %s118, %s119
      %p128 = scmp.eq.s32.totalorder %s24, 0
      %p129 = por %p127, %p128
      %p130 = scmp.ne.s32.totalorder %s118, %s119
      %p131 = scmp.eq.s32.totalorder %s25, 7
      %p132 = por %p130, %p131
      %p134 = scmp.ne.s32.totalorder %s119, %s133
      %p135 = scmp.eq.s32.totalorder %s25, 0
      %p136 = por %p134, %p135
      %s137 = ssub.s32 %s19, %s26
      %p138 = scmp.eq.s32.totalorder %s137, 0
      %s140 = sadd.s32 %s139, 1
      %s141 = scalar_select %p138, %s139, %s140
      %p144 = pneg %p138
      %p145 = scmp.eq.s32.totalorder %s19, 7
      %p146 = por %p144, %p145
      %p147 = scmp.ne.s32.totalorder %s139, %s142
      %p148 = scmp.eq.s32.totalorder %s19, 0
      %p149 = por %p147, %p148
      %p150 = scmp.ne.s32.totalorder %s139, %s142
      %p151 = scmp.eq.s32.totalorder %s24, 7
      %p152 = por %p150, %p151
      %p153 = scmp.ne.s32.totalorder %s142, %s143
      %p154 = scmp.eq.s32.totalorder %s24, 0
      %p155 = por %p153, %p154
      %p156 = scmp.ne.s32.totalorder %s142, %s143
      %p157 = scmp.eq.s32.totalorder %s25, 7
      %p158 = por %p156, %p157
      %p160 = scmp.ne.s32.totalorder %s143, %s159
      %p161 = scmp.eq.s32.totalorder %s25, 0
      %p162 = por %p160, %p161
      %p163 = scmp.le.s32.totalorder 1, %s19
      %p164 = scmp.lt.s32.totalorder %s19, 9
      %p165 = pnand %p163, %p164
      %p166 = pneg %p165
      // Predicated region
      $region9: #{tpu_custom_call.1} parent=5 // pred_check
        _
      $region10: #{tpu_custom_call.1} parent=5 // pred_check_branch
        %168 = sbr.rel (%p165) target = $region12
      $region11: #{tpu_custom_call.1} parent=5 // pred_region
        %s169 = ssub.s32 %s19, 1
        // Predicated region
        $region13: #{tpu_custom_call.1} parent=11 // pred_check
          %p170 = pneg %p66
        $region14: #{tpu_custom_call.1} parent=11 // pred_check_branch
          %172 = sbr.rel (%p170) target = $region16
        $region15: #{tpu_custom_call.1} parent=11 // pred_region
          %174 = vsyncadd [#allocation6], 0
          %s175 = sshll.u32 %s1, 4
          %s176 = int_to_ptr.hbm [resolvable:$true] %s175
          %s177 = sshll.u32 [#allocation5], 4
          %s178 = int_to_ptr.vmem [resolvable:$true] %s177
          %183 = dma.hbm_to_vmem [thread:$0]  %s176, 2048, %s178, [#allocation6], 128, 128, 8
        $region16: #{tpu_custom_call.1} parent=11 // pred_fallthru
          _
        // Predicated region
        $region17: #{tpu_custom_call.1} parent=11 // pred_check
          %p184 = pneg %p87
        $region18: #{tpu_custom_call.1} parent=11 // pred_check_branch
          %186 = sbr.rel (%p184) target = $region20
        $region19: #{tpu_custom_call.1} parent=11 // pred_region
          %188 = vsyncadd [#allocation6], 0
          %s190 = sshll.u32 %s2, 4
          %s191 = int_to_ptr.hbm [resolvable:$true] %s190
          %s192 = sshll.u32 [#allocation7], 4
          %s193 = int_to_ptr.vmem [resolvable:$true] %s192
          %195 = dma.hbm_to_vmem [thread:$0]  %s191, 32, %s193, [#allocation6]
        $region20: #{tpu_custom_call.1} parent=11 // pred_fallthru
          _
        // Predicated region
        $region21: #{tpu_custom_call.1} parent=11 // pred_check
          %p196 = pneg %p108
        $region22: #{tpu_custom_call.1} parent=11 // pred_check_branch
          %198 = sbr.rel (%p196) target = $region24
        $region23: #{tpu_custom_call.1} parent=11 // pred_region
          %200 = vsyncadd [#allocation9], 0
          %s201 = sshll.u32 %s3, 4
          %s202 = int_to_ptr.hbm [resolvable:$true] %s201
          %s203 = sshll.u32 [#allocation8], 4
          %s204 = int_to_ptr.vmem [resolvable:$true] %s203
          %209 = dma.hbm_to_vmem [thread:$0]  %s202, 2048, %s204, [#allocation9], 64, 64, 4
        $region24: #{tpu_custom_call.1} parent=11 // pred_fallthru
          _
        // Predicated region
        $region25: #{tpu_custom_call.1} parent=11 // pred_check
          %p210 = pneg %p129
        $region26: #{tpu_custom_call.1} parent=11 // pred_check_branch
          %212 = sbr.rel (%p210) target = $region28
        $region27: #{tpu_custom_call.1} parent=11 // pred_region
          _
        $region28: #{tpu_custom_call.1} parent=11 // pred_fallthru
          _
      $region12: #{tpu_custom_call.1} parent=5 // pred_fallthru
        _
      %p213 = scmp.lt.s32.totalorder %s19, 8
      // Predicated region
      $region29: #{tpu_custom_call.1} parent=5 // pred_check
        %p214 = pneg %p213
      $region30: #{tpu_custom_call.1} parent=5 // pred_check_branch
        %216 = sbr.rel (%p214) target = $region32
      $region31: #{tpu_custom_call.1} parent=5 // pred_region
        // Predicated region
        $region33: #{tpu_custom_call.1} parent=31 // pred_check
          %p217 = pneg %p39
        $region34: #{tpu_custom_call.1} parent=31 // pred_check_branch
          %219 = sbr.rel (%p217) target = $region36
        $region35: #{tpu_custom_call.1} parent=31 // pred_region
          %s220 = sand.u32 %s29, 1
          %s221 = scalar_lea.sflag [#allocation3], %s220
          %s222 = sand.u32 %s29, 1
          %s223 = smul.addr %s222, 128
          %s224 = scalar_lea.vmem [#allocation2], %s223
          %s225 = smul.u32 32, %s19
          %227 = vsyncadd %s221, 0
          %s228 = smul.addr %s225, 4
          %s229 = scalar_lea.hbm %s0, %s228
          %s230 = sshll.u32 %s229, 4
          %s231 = int_to_ptr.hbm [resolvable:$true] %s230
          %s232 = sshll.u32 %s224, 4
          %s233 = int_to_ptr.vmem [resolvable:$true] %s232
          %238 = dma.hbm_to_vmem [thread:$0]  %s231, 2048, %s233, %s221, 64, 64, 4
        $region36: #{tpu_custom_call.1} parent=31 // pred_fallthru
          _
      $region32: #{tpu_custom_call.1} parent=5 // pred_fallthru
        _
      %p239 = scmp.le.s32.totalorder 1, %s19
      %p240 = scmp.lt.s32.totalorder %s19, 9
      %p241 = pnand %p239, %p240
      %p242 = pneg %p241
      // Predicated region
      $region37: #{tpu_custom_call.1} parent=5 // pred_check
        _
      $region38: #{tpu_custom_call.1} parent=5 // pred_check_branch
        %244 = sbr.rel (%p241) target = $region40
      $region39: #{tpu_custom_call.1} parent=5 // pred_region
        %s245 = ssub.s32 %s19, 1
        %s246 = sand.u32 %s32, 1
        %s247 = scalar_lea.sflag [#allocation3], %s246
        %s248 = sand.u32 %s32, 1
        %s249 = smul.addr %s248, 128
        %s250 = scalar_lea.vmem [#allocation2], %s249
        // Predicated region
        $region41: #{tpu_custom_call.1} parent=39 // pred_check
          %p251 = pneg %p45
        $region42: #{tpu_custom_call.1} parent=39 // pred_check_branch
          %253 = sbr.rel (%p251) target = $region44
        $region43: #{tpu_custom_call.1} parent=39 // pred_region
          %255 = dma.done %s247, 2048
        $region44: #{tpu_custom_call.1} parent=39 // pred_fallthru
          _
        // Predicated region
        $region45: #{tpu_custom_call.1} parent=39 // pred_check
          %p256 = pneg %p66
        $region46: #{tpu_custom_call.1} parent=39 // pred_check_branch
          %258 = sbr.rel (%p256) target = $region48
        $region47: #{tpu_custom_call.1} parent=39 // pred_region
          %260 = dma.done [#allocation6], 2048
        $region48: #{tpu_custom_call.1} parent=39 // pred_fallthru
          _
        // Predicated region
        $region49: #{tpu_custom_call.1} parent=39 // pred_check
          %p261 = pneg %p87
        $region50: #{tpu_custom_call.1} parent=39 // pred_check_branch
          %263 = sbr.rel (%p261) target = $region52
        $region51: #{tpu_custom_call.1} parent=39 // pred_region
          %265 = dma.done [#allocation6], 32
        $region52: #{tpu_custom_call.1} parent=39 // pred_fallthru
          _
        // Predicated region
        $region53: #{tpu_custom_call.1} parent=39 // pred_check
          %p266 = pneg %p108
        $region54: #{tpu_custom_call.1} parent=39 // pred_check_branch
          %268 = sbr.rel (%p266) target = $region56
        $region55: #{tpu_custom_call.1} parent=39 // pred_region
          %270 = dma.done [#allocation9], 2048
        $region56: #{tpu_custom_call.1} parent=39 // pred_fallthru
          _
        %s271 = sand.u32 %s32, 1
        %s272 = scalar_lea.sflag [#allocation3], %s271
        %s273 = sand.u32 %s32, 1
        %s274 = smul.addr %s273, 128
        %s275 = scalar_lea.vmem [#allocation2], %s274
        %p276 = pneg %p45
        %p277 = pneg %p42
        %p278 = pneg %p66
        %p279 = pneg %p63
        %p280 = pneg %p87
        %p281 = pneg %p84
        %p282 = pneg %p108
        %p283 = pneg %p105
        %p284 = pneg %p129
        %p285 = pneg %p126
        %p286 = pneg %p155
        %p287 = pneg %p152
        %s288 = sand.u32 %s142, 1
        %s289 = scalar_lea.sflag [#allocation4], %s288
        %s290 = sand.u32 %s142, 1
        %s291 = smul.addr %s290, 128
        %s292 = scalar_lea.vmem [#allocation10], %s291
        %s293 = smul.u32 32, %s24
        %s294 = smul.u32 32, %s24
        %v295 = vld [vmem:[%s250] sm:$0xf]
        %v296 = vld [vmem:[%s250 + $0x4] sm:$0xf]
        %v297 = vld [vmem:[%s250 + $0x8] sm:$0xf]
        %v298 = vld [vmem:[%s250 + $0xc] sm:$0xf]
        %v299 = vld [vmem:[%s250 + $0x10] sm:$0xf]
        %v300 = vld [vmem:[%s250 + $0x14] sm:$0xf]
        %v301 = vld [vmem:[%s250 + $0x18] sm:$0xf]
        %v302 = vld [vmem:[%s250 + $0x1c] sm:$0xf]
        %v303 = vld [vmem:[%s250 + $0x20] sm:$0xf]
        %v304 = vld [vmem:[%s250 + $0x24] sm:$0xf]
        %v305 = vld [vmem:[%s250 + $0x28] sm:$0xf]
        %v306 = vld [vmem:[%s250 + $0x2c] sm:$0xf]
        %v307 = vld [vmem:[%s250 + $0x30] sm:$0xf]
        %v308 = vld [vmem:[%s250 + $0x34] sm:$0xf]
        %v309 = vld [vmem:[%s250 + $0x38] sm:$0xf]
        %v310 = vld [vmem:[%s250 + $0x3c] sm:$0xf]
        %v311 = vld [vmem:[%s250 + $0x40] sm:$0xf]
        %v312 = vld [vmem:[%s250 + $0x44] sm:$0xf]
        %v313 = vld [vmem:[%s250 + $0x48] sm:$0xf]
        %v314 = vld [vmem:[%s250 + $0x4c] sm:$0xf]
        %v315 = vld [vmem:[%s250 + $0x50] sm:$0xf]
        %v316 = vld [vmem:[%s250 + $0x54] sm:$0xf]
        %v317 = vld [vmem:[%s250 + $0x58] sm:$0xf]
        %v318 = vld [vmem:[%s250 + $0x5c] sm:$0xf]
        %v319 = vld [vmem:[%s250 + $0x60] sm:$0xf]
        %v320 = vld [vmem:[%s250 + $0x64] sm:$0xf]
        %v321 = vld [vmem:[%s250 + $0x68] sm:$0xf]
        %v322 = vld [vmem:[%s250 + $0x6c] sm:$0xf]
        %v323 = vld [vmem:[%s250 + $0x70] sm:$0xf]
        %v324 = vld [vmem:[%s250 + $0x74] sm:$0xf]
        %v325 = vld [vmem:[%s250 + $0x78] sm:$0xf]
        %v326 = vld [vmem:[%s250 + $0x7c] sm:$0xf]
        %v327 = vld [vmem:[#allocation5] sm:$0xff]
        %v328 = vld [vmem:[#allocation5 + $0x8] sm:$0xff]
        %v329 = vld [vmem:[#allocation5 + $0x10] sm:$0xff]
        %v330 = vld [vmem:[#allocation5 + $0x18] sm:$0xff]
        %v331 = vld [vmem:[#allocation5 + $0x20] sm:$0xff]
        %v332 = vld [vmem:[#allocation5 + $0x28] sm:$0xff]
        %v333 = vld [vmem:[#allocation5 + $0x30] sm:$0xff]
        %v334 = vld [vmem:[#allocation5 + $0x38] sm:$0xff]
        %v335 = vld [vmem:[#allocation5 + $0x40] sm:$0xff]
        %v336 = vld [vmem:[#allocation5 + $0x48] sm:$0xff]
        %v337 = vld [vmem:[#allocation5 + $0x50] sm:$0xff]
        %v338 = vld [vmem:[#allocation5 + $0x58] sm:$0xff]
        %v339 = vld [vmem:[#allocation5 + $0x60] sm:$0xff]
        %v340 = vld [vmem:[#allocation5 + $0x68] sm:$0xff]
        %v341 = vld [vmem:[#allocation5 + $0x70] sm:$0xff]
        %v342 = vld [vmem:[#allocation5 + $0x78] sm:$0xff]
        %v343 = vld [vmem:[#allocation7] sm:$0x3]
        %v344 = vunpack.c.l.bf16 %v343
        %v346 = vperm.slane %v344, 0
        %v347 = vperm.slane %v344, 2
        %v350 = vperm.slane %v346, 0
        %v351 = vperm.slane %v347, 0
        %v384 = vunpack.c.l.b16 %v295
        %v385 = vunpack.c.l.b16 %v296
        %v386 = vunpack.c.l.b16 %v297
        %v387 = vunpack.c.l.b16 %v298
        %v388 = vunpack.c.l.b16 %v299
        %v389 = vunpack.c.l.b16 %v300
        %v390 = vunpack.c.l.b16 %v301
        %v391 = vunpack.c.l.b16 %v302
        %v392 = vunpack.c.l.b16 %v303
        %v393 = vunpack.c.l.b16 %v304
        %v394 = vunpack.c.l.b16 %v305
        %v395 = vunpack.c.l.b16 %v306
        %v396 = vunpack.c.l.b16 %v307
        %v397 = vunpack.c.l.b16 %v308
        %v398 = vunpack.c.l.b16 %v309
        %v399 = vunpack.c.l.b16 %v310
        %v400 = vunpack.c.l.b16 %v311
        %v401 = vunpack.c.l.b16 %v312
        %v402 = vunpack.c.l.b16 %v313
        %v403 = vunpack.c.l.b16 %v314
        %v404 = vunpack.c.l.b16 %v315
        %v405 = vunpack.c.l.b16 %v316
        %v406 = vunpack.c.l.b16 %v317
        %v407 = vunpack.c.l.b16 %v318
        %v408 = vunpack.c.l.b16 %v319
        %v409 = vunpack.c.l.b16 %v320
        %v410 = vunpack.c.l.b16 %v321
        %v411 = vunpack.c.l.b16 %v322
        %v412 = vunpack.c.l.b16 %v323
        %v413 = vunpack.c.l.b16 %v324
        %v414 = vunpack.c.l.b16 %v325
        %v415 = vunpack.c.l.b16 %v326
        %v416 = vpack.c.b16 %v385, %v384
        %v417 = vpack.c.b16 %v387, %v386
        %v418 = vpack.c.b16 %v389, %v388
        %v419 = vpack.c.b16 %v391, %v390
        %v420 = vpack.c.b16 %v393, %v392
        %v421 = vpack.c.b16 %v395, %v394
        %v422 = vpack.c.b16 %v397, %v396
        %v423 = vpack.c.b16 %v399, %v398
        %v424 = vpack.c.b16 %v401, %v400
        %v425 = vpack.c.b16 %v403, %v402
        %v426 = vpack.c.b16 %v405, %v404
        %v427 = vpack.c.b16 %v407, %v406
        %v428 = vpack.c.b16 %v409, %v408
        %v429 = vpack.c.b16 %v411, %v410
        %v430 = vpack.c.b16 %v413, %v412
        %v431 = vpack.c.b16 %v415, %v414
        %v464 = vunpack.c.l.b16 %v327
        %v465 = vunpack.c.h.b16 %v327
        %v466 = vunpack.c.l.b16 %v328
        %v467 = vunpack.c.h.b16 %v328
        %v468 = vunpack.c.l.b16 %v329
        %v469 = vunpack.c.h.b16 %v329
        %v470 = vunpack.c.l.b16 %v330
        %v471 = vunpack.c.h.b16 %v330
        %v472 = vunpack.c.l.b16 %v331
        %v473 = vunpack.c.h.b16 %v331
        %v474 = vunpack.c.l.b16 %v332
        %v475 = vunpack.c.h.b16 %v332
        %v476 = vunpack.c.l.b16 %v333
        %v477 = vunpack.c.h.b16 %v333
        %v478 = vunpack.c.l.b16 %v334
        %v479 = vunpack.c.h.b16 %v334
        %v480 = vunpack.c.l.b16 %v335
        %v481 = vunpack.c.h.b16 %v335
        %v482 = vunpack.c.l.b16 %v336
        %v483 = vunpack.c.h.b16 %v336
        %v484 = vunpack.c.l.b16 %v337
        %v485 = vunpack.c.h.b16 %v337
        %v486 = vunpack.c.l.b16 %v338
        %v487 = vunpack.c.h.b16 %v338
        %v488 = vunpack.c.l.b16 %v339
        %v489 = vunpack.c.h.b16 %v339
        %v490 = vunpack.c.l.b16 %v340
        %v491 = vunpack.c.h.b16 %v340
        %v492 = vunpack.c.l.b16 %v341
        %v493 = vunpack.c.h.b16 %v341
        %v494 = vunpack.c.l.b16 %v342
        %v495 = vunpack.c.h.b16 %v342
        %v496 = vpack.c.b16 %v466, %v464
        %v497 = vpack.c.b16 %v467, %v465
        %v498 = vpack.c.b16 %v470, %v468
        %v499 = vpack.c.b16 %v471, %v469
        %v500 = vpack.c.b16 %v474, %v472
        %v501 = vpack.c.b16 %v475, %v473
        %v502 = vpack.c.b16 %v478, %v476
        %v503 = vpack.c.b16 %v479, %v477
        %v504 = vpack.c.b16 %v482, %v480
        %v505 = vpack.c.b16 %v483, %v481
        %v506 = vpack.c.b16 %v486, %v484
        %v507 = vpack.c.b16 %v487, %v485
        %v508 = vpack.c.b16 %v490, %v488
        %v509 = vpack.c.b16 %v491, %v489
        %v510 = vpack.c.b16 %v494, %v492
        %v511 = vpack.c.b16 %v495, %v493
        %528 = vmatpush.bf16.msra.mxu0 %v510
        %529 = vmatpush.bf16.msra.mxu0 %v508
        %530 = vmatpush.bf16.msra.mxu0 %v506
        %531 = vmatpush.bf16.msra.mxu0 %v504
        %532 = vmatpush.bf16.msra.mxu0 %v502
        %533 = vmatpush.bf16.msra.mxu0 %v500
        %534 = vmatpush.bf16.msra.mxu0 %v498
        %535 = vmatpush.bf16.msra.mxu0 %v496
        %536 = vmatmul.bf16.gmra.mxu0 %v416
        %v537 = vpop.f32.mrf.mxu0
        %v538 = vadd.f32 %v350, %v537
        %v539 = vpop.f32.mrf.mxu0
        %v540 = vadd.f32 %v350, %v539
        %541 = vmatmul.bf16.gmra.mxu0 %v417
        %v542 = vpop.f32.mrf.mxu0
        %v543 = vadd.f32 %v350, %v542
        %v544 = vpop.f32.mrf.mxu0
        %v545 = vadd.f32 %v350, %v544
        %546 = vmatmul.bf16.gmra.mxu0 %v418
        %v547 = vpop.f32.mrf.mxu0
        %v548 = vadd.f32 %v350, %v547
        %v549 = vpop.f32.mrf.mxu0
        %v550 = vadd.f32 %v350, %v549
        %551 = vmatmul.bf16.gmra.mxu0 %v419
        %v552 = vpop.f32.mrf.mxu0
        %v553 = vadd.f32 %v350, %v552
        %v554 = vpop.f32.mrf.mxu0
        %v555 = vadd.f32 %v350, %v554
        %556 = vmatmul.bf16.gmra.mxu0 %v420
        %v557 = vpop.f32.mrf.mxu0
        %v558 = vadd.f32 %v350, %v557
        %v559 = vpop.f32.mrf.mxu0
        %v560 = vadd.f32 %v350, %v559
        %561 = vmatmul.bf16.gmra.mxu0 %v421
        %v562 = vpop.f32.mrf.mxu0
        %v563 = vadd.f32 %v350, %v562
        %v564 = vpop.f32.mrf.mxu0
        %v565 = vadd.f32 %v350, %v564
        %566 = vmatmul.bf16.gmra.mxu0 %v422
        %v567 = vpop.f32.mrf.mxu0
        %v568 = vadd.f32 %v350, %v567
        %v569 = vpop.f32.mrf.mxu0
        %v570 = vadd.f32 %v350, %v569
        %571 = vmatmul.bf16.gmra.mxu0 %v423
        %v572 = vpop.f32.mrf.mxu0
        %v573 = vadd.f32 %v350, %v572
        %v574 = vpop.f32.mrf.mxu0
        %v575 = vadd.f32 %v350, %v574
        %576 = vmatmul.bf16.gmra.mxu0 %v424
        %v577 = vpop.f32.mrf.mxu0
        %v578 = vadd.f32 %v350, %v577
        %v579 = vpop.f32.mrf.mxu0
        %v580 = vadd.f32 %v350, %v579
        %581 = vmatmul.bf16.gmra.mxu0 %v425
        %v582 = vpop.f32.mrf.mxu0
        %v583 = vadd.f32 %v350, %v582
        %v584 = vpop.f32.mrf.mxu0
        %v585 = vadd.f32 %v350, %v584
        %586 = vmatmul.bf16.gmra.mxu0 %v426
        %v587 = vpop.f32.mrf.mxu0
        %v588 = vadd.f32 %v350, %v587
        %v589 = vpop.f32.mrf.mxu0
        %v590 = vadd.f32 %v350, %v589
        %591 = vmatmul.bf16.gmra.mxu0 %v427
        %v592 = vpop.f32.mrf.mxu0
        %v593 = vadd.f32 %v350, %v592
        %v594 = vpop.f32.mrf.mxu0
        %v595 = vadd.f32 %v350, %v594
        %596 = vmatmul.bf16.gmra.mxu0 %v428
        %v597 = vpop.f32.mrf.mxu0
        %v598 = vadd.f32 %v350, %v597
        %v599 = vpop.f32.mrf.mxu0
        %v600 = vadd.f32 %v350, %v599
        %601 = vmatmul.bf16.gmra.mxu0 %v429
        %v602 = vpop.f32.mrf.mxu0
        %v603 = vadd.f32 %v350, %v602
        %v604 = vpop.f32.mrf.mxu0
        %v605 = vadd.f32 %v350, %v604
        %606 = vmatmul.bf16.gmra.mxu0 %v430
        %v607 = vpop.f32.mrf.mxu0
        %v608 = vadd.f32 %v350, %v607
        %v609 = vpop.f32.mrf.mxu0
        %v610 = vadd.f32 %v350, %v609
        %611 = vmatmul.bf16.gmra.mxu0 %v431
        %v612 = vpop.f32.mrf.mxu0
        %v613 = vadd.f32 %v350, %v612
        %v614 = vpop.f32.mrf.mxu0
        %v615 = vadd.f32 %v350, %v614
        %616 = vdwg.mxu0
        %617 = vmatpush.bf16.msra.mxu0 %v511
        %618 = vmatpush.bf16.msra.mxu0 %v509
        %619 = vmatpush.bf16.msra.mxu0 %v507
        %620 = vmatpush.bf16.msra.mxu0 %v505
        %621 = vmatpush.bf16.msra.mxu0 %v503
        %622 = vmatpush.bf16.msra.mxu0 %v501
        %623 = vmatpush.bf16.msra.mxu0 %v499
        %624 = vmatpush.bf16.msra.mxu0 %v497
        %625 = vmatmul.bf16.gmra.mxu0 %v416
        %v626 = vpop.f32.mrf.mxu0
        %v627 = vadd.f32 %v351, %v626
        %v628 = vpop.f32.mrf.mxu0
        %v629 = vadd.f32 %v351, %v628
        %630 = vmatmul.bf16.gmra.mxu0 %v417
        %v631 = vpop.f32.mrf.mxu0
        %v632 = vadd.f32 %v351, %v631
        %v633 = vpop.f32.mrf.mxu0
        %v634 = vadd.f32 %v351, %v633
        %635 = vmatmul.bf16.gmra.mxu0 %v418
        %v636 = vpop.f32.mrf.mxu0
        %v637 = vadd.f32 %v351, %v636
        %v638 = vpop.f32.mrf.mxu0
        %v639 = vadd.f32 %v351, %v638
        %640 = vmatmul.bf16.gmra.mxu0 %v419
        %v641 = vpop.f32.mrf.mxu0
        %v642 = vadd.f32 %v351, %v641
        %v643 = vpop.f32.mrf.mxu0
        %v644 = vadd.f32 %v351, %v643
        %645 = vmatmul.bf16.gmra.mxu0 %v420
        %v646 = vpop.f32.mrf.mxu0
        %v647 = vadd.f32 %v351, %v646
        %v648 = vpop.f32.mrf.mxu0
        %v649 = vadd.f32 %v351, %v648
        %650 = vmatmul.bf16.gmra.mxu0 %v421
        %v651 = vpop.f32.mrf.mxu0
        %v652 = vadd.f32 %v351, %v651
        %v653 = vpop.f32.mrf.mxu0
        %v654 = vadd.f32 %v351, %v653
        %655 = vmatmul.bf16.gmra.mxu0 %v422
        %v656 = vpop.f32.mrf.mxu0
        %v657 = vadd.f32 %v351, %v656
        %v658 = vpop.f32.mrf.mxu0
        %v659 = vadd.f32 %v351, %v658
        %660 = vmatmul.bf16.gmra.mxu0 %v423
        %v661 = vpop.f32.mrf.mxu0
        %v662 = vadd.f32 %v351, %v661
        %v663 = vpop.f32.mrf.mxu0
        %v664 = vadd.f32 %v351, %v663
        %665 = vmatmul.bf16.gmra.mxu0 %v424
        %v666 = vpop.f32.mrf.mxu0
        %v667 = vadd.f32 %v351, %v666
        %v668 = vpop.f32.mrf.mxu0
        %v669 = vadd.f32 %v351, %v668
        %670 = vmatmul.bf16.gmra.mxu0 %v425
        %v671 = vpop.f32.mrf.mxu0
        %v672 = vadd.f32 %v351, %v671
        %v673 = vpop.f32.mrf.mxu0
        %v674 = vadd.f32 %v351, %v673
        %675 = vmatmul.bf16.gmra.mxu0 %v426
        %v676 = vpop.f32.mrf.mxu0
        %v677 = vadd.f32 %v351, %v676
        %v678 = vpop.f32.mrf.mxu0
        %v679 = vadd.f32 %v351, %v678
        %680 = vmatmul.bf16.gmra.mxu0 %v427
        %v681 = vpop.f32.mrf.mxu0
        %v682 = vadd.f32 %v351, %v681
        %v683 = vpop.f32.mrf.mxu0
        %v684 = vadd.f32 %v351, %v683
        %685 = vmatmul.bf16.gmra.mxu0 %v428
        %v686 = vpop.f32.mrf.mxu0
        %v687 = vadd.f32 %v351, %v686
        %v688 = vpop.f32.mrf.mxu0
        %v689 = vadd.f32 %v351, %v688
        %690 = vmatmul.bf16.gmra.mxu0 %v429
        %v691 = vpop.f32.mrf.mxu0
        %v692 = vadd.f32 %v351, %v691
        %v693 = vpop.f32.mrf.mxu0
        %v694 = vadd.f32 %v351, %v693
        %695 = vmatmul.bf16.gmra.mxu0 %v430
        %v696 = vpop.f32.mrf.mxu0
        %v697 = vadd.f32 %v351, %v696
        %v698 = vpop.f32.mrf.mxu0
        %v699 = vadd.f32 %v351, %v698
        %700 = vmatmul.bf16.gmra.mxu0 %v431
        %v701 = vpop.f32.mrf.mxu0
        %v702 = vadd.f32 %v351, %v701
        %v703 = vpop.f32.mrf.mxu0
        %v704 = vadd.f32 %v351, %v703
        %705 = vdwg.mxu0
        %v706 = vmax.f32 %v538, 0.0
        %v707 = vmax.f32 %v627, 0.0
        %v708 = vmax.f32 %v540, 0.0
        %v709 = vmax.f32 %v629, 0.0
        %v710 = vmax.f32 %v543, 0.0
        %v711 = vmax.f32 %v632, 0.0
        %v712 = vmax.f32 %v545, 0.0
        %v713 = vmax.f32 %v634, 0.0
        %v714 = vmax.f32 %v548, 0.0
        %v715 = vmax.f32 %v637, 0.0
        %v716 = vmax.f32 %v550, 0.0
        %v717 = vmax.f32 %v639, 0.0
        %v718 = vmax.f32 %v553, 0.0
        %v719 = vmax.f32 %v642, 0.0
        %v720 = vmax.f32 %v555, 0.0
        %v721 = vmax.f32 %v644, 0.0
        %v722 = vmax.f32 %v558, 0.0
        %v723 = vmax.f32 %v647, 0.0
        %v724 = vmax.f32 %v560, 0.0
        %v725 = vmax.f32 %v649, 0.0
        %v726 = vmax.f32 %v563, 0.0
        %v727 = vmax.f32 %v652, 0.0
        %v728 = vmax.f32 %v565, 0.0
        %v729 = vmax.f32 %v654, 0.0
        %v730 = vmax.f32 %v568, 0.0
        %v731 = vmax.f32 %v657, 0.0
        %v732 = vmax.f32 %v570, 0.0
        %v733 = vmax.f32 %v659, 0.0
        %v734 = vmax.f32 %v573, 0.0
        %v735 = vmax.f32 %v662, 0.0
        %v736 = vmax.f32 %v575, 0.0
        %v737 = vmax.f32 %v664, 0.0
        %v738 = vmax.f32 %v578, 0.0
        %v739 = vmax.f32 %v667, 0.0
        %v740 = vmax.f32 %v580, 0.0
        %v741 = vmax.f32 %v669, 0.0
        %v742 = vmax.f32 %v583, 0.0
        %v743 = vmax.f32 %v672, 0.0
        %v744 = vmax.f32 %v585, 0.0
        %v745 = vmax.f32 %v674, 0.0
        %v746 = vmax.f32 %v588, 0.0
        %v747 = vmax.f32 %v677, 0.0
        %v748 = vmax.f32 %v590, 0.0
        %v749 = vmax.f32 %v679, 0.0
        %v750 = vmax.f32 %v593, 0.0
        %v751 = vmax.f32 %v682, 0.0
        %v752 = vmax.f32 %v595, 0.0
        %v753 = vmax.f32 %v684, 0.0
        %v754 = vmax.f32 %v598, 0.0
        %v755 = vmax.f32 %v687, 0.0
        %v756 = vmax.f32 %v600, 0.0
        %v757 = vmax.f32 %v689, 0.0
        %v758 = vmax.f32 %v603, 0.0
        %v759 = vmax.f32 %v692, 0.0
        %v760 = vmax.f32 %v605, 0.0
        %v761 = vmax.f32 %v694, 0.0
        %v762 = vmax.f32 %v608, 0.0
        %v763 = vmax.f32 %v697, 0.0
        %v764 = vmax.f32 %v610, 0.0
        %v765 = vmax.f32 %v699, 0.0
        %v766 = vmax.f32 %v613, 0.0
        %v767 = vmax.f32 %v702, 0.0
        %v768 = vmax.f32 %v615, 0.0
        %v769 = vmax.f32 %v704, 0.0
        %v770 = vpack.c.bf16 %v708, %v706
        %v771 = vpack.c.bf16 %v709, %v707
        %v772 = vpack.c.bf16 %v712, %v710
        %v773 = vpack.c.bf16 %v713, %v711
        %v774 = vpack.c.bf16 %v716, %v714
        %v775 = vpack.c.bf16 %v717, %v715
        %v776 = vpack.c.bf16 %v720, %v718
        %v777 = vpack.c.bf16 %v721, %v719
        %v778 = vpack.c.bf16 %v724, %v722
        %v779 = vpack.c.bf16 %v725, %v723
        %v780 = vpack.c.bf16 %v728, %v726
        %v781 = vpack.c.bf16 %v729, %v727
        %v782 = vpack.c.bf16 %v732, %v730
        %v783 = vpack.c.bf16 %v733, %v731
        %v784 = vpack.c.bf16 %v736, %v734
        %v785 = vpack.c.bf16 %v737, %v735
        %v786 = vpack.c.bf16 %v740, %v738
        %v787 = vpack.c.bf16 %v741, %v739
        %v788 = vpack.c.bf16 %v744, %v742
        %v789 = vpack.c.bf16 %v745, %v743
        %v790 = vpack.c.bf16 %v748, %v746
        %v791 = vpack.c.bf16 %v749, %v747
        %v792 = vpack.c.bf16 %v752, %v750
        %v793 = vpack.c.bf16 %v753, %v751
        %v794 = vpack.c.bf16 %v756, %v754
        %v795 = vpack.c.bf16 %v757, %v755
        %v796 = vpack.c.bf16 %v760, %v758
        %v797 = vpack.c.bf16 %v761, %v759
        %v798 = vpack.c.bf16 %v764, %v762
        %v799 = vpack.c.bf16 %v765, %v763
        %v800 = vpack.c.bf16 %v768, %v766
        %v801 = vpack.c.bf16 %v769, %v767
        %v802 = vld [vmem:[#allocation8] sm:$0xf]
        %v803 = vld [vmem:[#allocation8 + $0x4] sm:$0xf]
        %v804 = vld [vmem:[#allocation8 + $0x8] sm:$0xf]
        %v805 = vld [vmem:[#allocation8 + $0xc] sm:$0xf]
        %v806 = vld [vmem:[#allocation8 + $0x10] sm:$0xf]
        %v807 = vld [vmem:[#allocation8 + $0x14] sm:$0xf]
        %v808 = vld [vmem:[#allocation8 + $0x18] sm:$0xf]
        %v809 = vld [vmem:[#allocation8 + $0x1c] sm:$0xf]
        %v810 = vld [vmem:[#allocation8 + $0x20] sm:$0xf]
        %v811 = vld [vmem:[#allocation8 + $0x24] sm:$0xf]
        %v812 = vld [vmem:[#allocation8 + $0x28] sm:$0xf]
        %v813 = vld [vmem:[#allocation8 + $0x2c] sm:$0xf]
        %v814 = vld [vmem:[#allocation8 + $0x30] sm:$0xf]
        %v815 = vld [vmem:[#allocation8 + $0x34] sm:$0xf]
        %v816 = vld [vmem:[#allocation8 + $0x38] sm:$0xf]
        %v817 = vld [vmem:[#allocation8 + $0x3c] sm:$0xf]
        %v818 = vld [vmem:[#allocation8 + $0x40] sm:$0xf]
        %v819 = vld [vmem:[#allocation8 + $0x44] sm:$0xf]
        %v820 = vld [vmem:[#allocation8 + $0x48] sm:$0xf]
        %v821 = vld [vmem:[#allocation8 + $0x4c] sm:$0xf]
        %v822 = vld [vmem:[#allocation8 + $0x50] sm:$0xf]
        %v823 = vld [vmem:[#allocation8 + $0x54] sm:$0xf]
        %v824 = vld [vmem:[#allocation8 + $0x58] sm:$0xf]
        %v825 = vld [vmem:[#allocation8 + $0x5c] sm:$0xf]
        %v826 = vld [vmem:[#allocation8 + $0x60] sm:$0xf]
        %v827 = vld [vmem:[#allocation8 + $0x64] sm:$0xf]
        %v828 = vld [vmem:[#allocation8 + $0x68] sm:$0xf]
        %v829 = vld [vmem:[#allocation8 + $0x6c] sm:$0xf]
        %v830 = vld [vmem:[#allocation8 + $0x70] sm:$0xf]
        %v831 = vld [vmem:[#allocation8 + $0x74] sm:$0xf]
        %v832 = vld [vmem:[#allocation8 + $0x78] sm:$0xf]
        %v833 = vld [vmem:[#allocation8 + $0x7c] sm:$0xf]
        %v834 = vld [vmem:[%s4] sm:$0x1]
        %v835 = vunpack.c.l.bf16 %v834
        %v836 = vperm.slane %v835, 0
        %v869 = vunpack.c.l.b16 %v802
        %v870 = vunpack.c.l.b16 %v803
        %v871 = vunpack.c.l.b16 %v804
        %v872 = vunpack.c.l.b16 %v805
        %v873 = vunpack.c.l.b16 %v806
        %v874 = vunpack.c.l.b16 %v807
        %v875 = vunpack.c.l.b16 %v808
        %v876 = vunpack.c.l.b16 %v809
        %v877 = vunpack.c.l.b16 %v810
        %v878 = vunpack.c.l.b16 %v811
        %v879 = vunpack.c.l.b16 %v812
        %v880 = vunpack.c.l.b16 %v813
        %v881 = vunpack.c.l.b16 %v814
        %v882 = vunpack.c.l.b16 %v815
        %v883 = vunpack.c.l.b16 %v816
        %v884 = vunpack.c.l.b16 %v817
        %v885 = vunpack.c.l.b16 %v818
        %v886 = vunpack.c.l.b16 %v819
        %v887 = vunpack.c.l.b16 %v820
        %v888 = vunpack.c.l.b16 %v821
        %v889 = vunpack.c.l.b16 %v822
        %v890 = vunpack.c.l.b16 %v823
        %v891 = vunpack.c.l.b16 %v824
        %v892 = vunpack.c.l.b16 %v825
        %v893 = vunpack.c.l.b16 %v826
        %v894 = vunpack.c.l.b16 %v827
        %v895 = vunpack.c.l.b16 %v828
        %v896 = vunpack.c.l.b16 %v829
        %v897 = vunpack.c.l.b16 %v830
        %v898 = vunpack.c.l.b16 %v831
        %v899 = vunpack.c.l.b16 %v832
        %v900 = vunpack.c.l.b16 %v833
        %v901 = vpack.c.b16 %v870, %v869
        %v902 = vpack.c.b16 %v872, %v871
        %v903 = vpack.c.b16 %v874, %v873
        %v904 = vpack.c.b16 %v876, %v875
        %v905 = vpack.c.b16 %v878, %v877
        %v906 = vpack.c.b16 %v880, %v879
        %v907 = vpack.c.b16 %v882, %v881
        %v908 = vpack.c.b16 %v884, %v883
        %v909 = vpack.c.b16 %v886, %v885
        %v910 = vpack.c.b16 %v888, %v887
        %v911 = vpack.c.b16 %v890, %v889
        %v912 = vpack.c.b16 %v892, %v891
        %v913 = vpack.c.b16 %v894, %v893
        %v914 = vpack.c.b16 %v896, %v895
        %v915 = vpack.c.b16 %v898, %v897
        %v916 = vpack.c.b16 %v900, %v899
        %933 = vmatpush.bf16.msra.mxu0 %v908
        %934 = vmatpush.bf16.msra.mxu0 %v907
        %935 = vmatpush.bf16.msra.mxu0 %v906
        %936 = vmatpush.bf16.msra.mxu0 %v905
        %937 = vmatpush.bf16.msra.mxu0 %v904
        %938 = vmatpush.bf16.msra.mxu0 %v903
        %939 = vmatpush.bf16.msra.mxu0 %v902
        %940 = vmatpush.bf16.msra.mxu0 %v901
        %941 = vmatmul.bf16.gmra.mxu0 %v770
        %v942 = vpop.f32.mrf.mxu0
        %v943 = vadd.f32 %v836, %v942
        %v944 = vpop.f32.mrf.mxu0
        %v945 = vadd.f32 %v836, %v944
        %946 = vmatmul.bf16.gmra.mxu0 %v772
        %v947 = vpop.f32.mrf.mxu0
        %v948 = vadd.f32 %v836, %v947
        %v949 = vpop.f32.mrf.mxu0
        %v950 = vadd.f32 %v836, %v949
        %951 = vmatmul.bf16.gmra.mxu0 %v774
        %v952 = vpop.f32.mrf.mxu0
        %v953 = vadd.f32 %v836, %v952
        %v954 = vpop.f32.mrf.mxu0
        %v955 = vadd.f32 %v836, %v954
        %956 = vmatmul.bf16.gmra.mxu0 %v776
        %v957 = vpop.f32.mrf.mxu0
        %v958 = vadd.f32 %v836, %v957
        %v959 = vpop.f32.mrf.mxu0
        %v960 = vadd.f32 %v836, %v959
        %961 = vmatmul.bf16.gmra.mxu0 %v778
        %v962 = vpop.f32.mrf.mxu0
        %v963 = vadd.f32 %v836, %v962
        %v964 = vpop.f32.mrf.mxu0
        %v965 = vadd.f32 %v836, %v964
        %966 = vmatmul.bf16.gmra.mxu0 %v780
        %v967 = vpop.f32.mrf.mxu0
        %v968 = vadd.f32 %v836, %v967
        %v969 = vpop.f32.mrf.mxu0
        %v970 = vadd.f32 %v836, %v969
        %971 = vmatmul.bf16.gmra.mxu0 %v782
        %v972 = vpop.f32.mrf.mxu0
        %v973 = vadd.f32 %v836, %v972
        %v974 = vpop.f32.mrf.mxu0
        %v975 = vadd.f32 %v836, %v974
        %976 = vmatmul.bf16.gmra.mxu0 %v784
        %v977 = vpop.f32.mrf.mxu0
        %v978 = vadd.f32 %v836, %v977
        %v979 = vpop.f32.mrf.mxu0
        %v980 = vadd.f32 %v836, %v979
        %981 = vmatmul.bf16.gmra.mxu0 %v786
        %v982 = vpop.f32.mrf.mxu0
        %v983 = vadd.f32 %v836, %v982
        %v984 = vpop.f32.mrf.mxu0
        %v985 = vadd.f32 %v836, %v984
        %986 = vmatmul.bf16.gmra.mxu0 %v788
        %v987 = vpop.f32.mrf.mxu0
        %v988 = vadd.f32 %v836, %v987
        %v989 = vpop.f32.mrf.mxu0
        %v990 = vadd.f32 %v836, %v989
        %991 = vmatmul.bf16.gmra.mxu0 %v790
        %v992 = vpop.f32.mrf.mxu0
        %v993 = vadd.f32 %v836, %v992
        %v994 = vpop.f32.mrf.mxu0
        %v995 = vadd.f32 %v836, %v994
        %996 = vmatmul.bf16.gmra.mxu0 %v792
        %v997 = vpop.f32.mrf.mxu0
        %v998 = vadd.f32 %v836, %v997
        %v999 = vpop.f32.mrf.mxu0
        %v1000 = vadd.f32 %v836, %v999
        %1001 = vmatmul.bf16.gmra.mxu0 %v794
        %v1002 = vpop.f32.mrf.mxu0
        %v1003 = vadd.f32 %v836, %v1002
        %v1004 = vpop.f32.mrf.mxu0
        %v1005 = vadd.f32 %v836, %v1004
        %1006 = vmatmul.bf16.gmra.mxu0 %v796
        %v1007 = vpop.f32.mrf.mxu0
        %v1008 = vadd.f32 %v836, %v1007
        %v1009 = vpop.f32.mrf.mxu0
        %v1010 = vadd.f32 %v836, %v1009
        %1011 = vmatmul.bf16.gmra.mxu0 %v798
        %v1012 = vpop.f32.mrf.mxu0
        %v1013 = vadd.f32 %v836, %v1012
        %v1014 = vpop.f32.mrf.mxu0
        %v1015 = vadd.f32 %v836, %v1014
        %1016 = vmatmul.bf16.gmra.mxu0 %v800
        %v1017 = vpop.f32.mrf.mxu0
        %v1018 = vadd.f32 %v836, %v1017
        %v1019 = vpop.f32.mrf.mxu0
        %v1020 = vadd.f32 %v836, %v1019
        %1021 = vdwg.mxu0
        %1022 = vmatpush.bf16.msra.mxu0 %v916
        %1023 = vmatpush.bf16.msra.mxu0 %v915
        %1024 = vmatpush.bf16.msra.mxu0 %v914
        %1025 = vmatpush.bf16.msra.mxu0 %v913
        %1026 = vmatpush.bf16.msra.mxu0 %v912
        %1027 = vmatpush.bf16.msra.mxu0 %v911
        %1028 = vmatpush.bf16.msra.mxu0 %v910
        %1029 = vmatpush.bf16.msra.mxu0 %v909
        %1030 = vmatmul.bf16.gmra.mxu0 %v771
        %v1031 = vpop.f32.mrf.mxu0
        %v1032 = vadd.f32 %v943, %v1031
        %v1033 = vpop.f32.mrf.mxu0
        %v1034 = vadd.f32 %v945, %v1033
        %1035 = vmatmul.bf16.gmra.mxu0 %v773
        %v1036 = vpop.f32.mrf.mxu0
        %v1037 = vadd.f32 %v948, %v1036
        %v1038 = vpop.f32.mrf.mxu0
        %v1039 = vadd.f32 %v950, %v1038
        %1040 = vmatmul.bf16.gmra.mxu0 %v775
        %v1041 = vpop.f32.mrf.mxu0
        %v1042 = vadd.f32 %v953, %v1041
        %v1043 = vpop.f32.mrf.mxu0
        %v1044 = vadd.f32 %v955, %v1043
        %1045 = vmatmul.bf16.gmra.mxu0 %v777
        %v1046 = vpop.f32.mrf.mxu0
        %v1047 = vadd.f32 %v958, %v1046
        %v1048 = vpop.f32.mrf.mxu0
        %v1049 = vadd.f32 %v960, %v1048
        %1050 = vmatmul.bf16.gmra.mxu0 %v779
        %v1051 = vpop.f32.mrf.mxu0
        %v1052 = vadd.f32 %v963, %v1051
        %v1053 = vpop.f32.mrf.mxu0
        %v1054 = vadd.f32 %v965, %v1053
        %1055 = vmatmul.bf16.gmra.mxu0 %v781
        %v1056 = vpop.f32.mrf.mxu0
        %v1057 = vadd.f32 %v968, %v1056
        %v1058 = vpop.f32.mrf.mxu0
        %v1059 = vadd.f32 %v970, %v1058
        %1060 = vmatmul.bf16.gmra.mxu0 %v783
        %v1061 = vpop.f32.mrf.mxu0
        %v1062 = vadd.f32 %v973, %v1061
        %v1063 = vpop.f32.mrf.mxu0
        %v1064 = vadd.f32 %v975, %v1063
        %1065 = vmatmul.bf16.gmra.mxu0 %v785
        %v1066 = vpop.f32.mrf.mxu0
        %v1067 = vadd.f32 %v978, %v1066
        %v1068 = vpop.f32.mrf.mxu0
        %v1069 = vadd.f32 %v980, %v1068
        %1070 = vmatmul.bf16.gmra.mxu0 %v787
        %v1071 = vpop.f32.mrf.mxu0
        %v1072 = vadd.f32 %v983, %v1071
        %v1073 = vpop.f32.mrf.mxu0
        %v1074 = vadd.f32 %v985, %v1073
        %1075 = vmatmul.bf16.gmra.mxu0 %v789
        %v1076 = vpop.f32.mrf.mxu0
        %v1077 = vadd.f32 %v988, %v1076
        %v1078 = vpop.f32.mrf.mxu0
        %v1079 = vadd.f32 %v990, %v1078
        %1080 = vmatmul.bf16.gmra.mxu0 %v791
        %v1081 = vpop.f32.mrf.mxu0
        %v1082 = vadd.f32 %v993, %v1081
        %v1083 = vpop.f32.mrf.mxu0
        %v1084 = vadd.f32 %v995, %v1083
        %1085 = vmatmul.bf16.gmra.mxu0 %v793
        %v1086 = vpop.f32.mrf.mxu0
        %v1087 = vadd.f32 %v998, %v1086
        %v1088 = vpop.f32.mrf.mxu0
        %v1089 = vadd.f32 %v1000, %v1088
        %1090 = vmatmul.bf16.gmra.mxu0 %v795
        %v1091 = vpop.f32.mrf.mxu0
        %v1092 = vadd.f32 %v1003, %v1091
        %v1093 = vpop.f32.mrf.mxu0
        %v1094 = vadd.f32 %v1005, %v1093
        %1095 = vmatmul.bf16.gmra.mxu0 %v797
        %v1096 = vpop.f32.mrf.mxu0
        %v1097 = vadd.f32 %v1008, %v1096
        %v1098 = vpop.f32.mrf.mxu0
        %v1099 = vadd.f32 %v1010, %v1098
        %1100 = vmatmul.bf16.gmra.mxu0 %v799
        %v1101 = vpop.f32.mrf.mxu0
        %v1102 = vadd.f32 %v1013, %v1101
        %v1103 = vpop.f32.mrf.mxu0
        %v1104 = vadd.f32 %v1015, %v1103
        %1105 = vmatmul.bf16.gmra.mxu0 %v801
        %v1106 = vpop.f32.mrf.mxu0
        %v1107 = vadd.f32 %v1018, %v1106
        %v1108 = vpop.f32.mrf.mxu0
        %v1109 = vadd.f32 %v1020, %v1108
        %1110 = vdwg.mxu0
        %v1111 = vpack.c.bf16 %v1032, %v1032
        %v1112 = vpack.c.bf16 %v1034, %v1034
        %v1113 = vpack.c.bf16 %v1037, %v1037
        %v1114 = vpack.c.bf16 %v1039, %v1039
        %v1115 = vpack.c.bf16 %v1042, %v1042
        %v1116 = vpack.c.bf16 %v1044, %v1044
        %v1117 = vpack.c.bf16 %v1047, %v1047
        %v1118 = vpack.c.bf16 %v1049, %v1049
        %v1119 = vpack.c.bf16 %v1052, %v1052
        %v1120 = vpack.c.bf16 %v1054, %v1054
        %v1121 = vpack.c.bf16 %v1057, %v1057
        %v1122 = vpack.c.bf16 %v1059, %v1059
        %v1123 = vpack.c.bf16 %v1062, %v1062
        %v1124 = vpack.c.bf16 %v1064, %v1064
        %v1125 = vpack.c.bf16 %v1067, %v1067
        %v1126 = vpack.c.bf16 %v1069, %v1069
        %v1127 = vpack.c.bf16 %v1072, %v1072
        %v1128 = vpack.c.bf16 %v1074, %v1074
        %v1129 = vpack.c.bf16 %v1077, %v1077
        %v1130 = vpack.c.bf16 %v1079, %v1079
        %v1131 = vpack.c.bf16 %v1082, %v1082
        %v1132 = vpack.c.bf16 %v1084, %v1084
        %v1133 = vpack.c.bf16 %v1087, %v1087
        %v1134 = vpack.c.bf16 %v1089, %v1089
        %v1135 = vpack.c.bf16 %v1092, %v1092
        %v1136 = vpack.c.bf16 %v1094, %v1094
        %v1137 = vpack.c.bf16 %v1097, %v1097
        %v1138 = vpack.c.bf16 %v1099, %v1099
        %v1139 = vpack.c.bf16 %v1102, %v1102
        %v1140 = vpack.c.bf16 %v1104, %v1104
        %v1141 = vpack.c.bf16 %v1107, %v1107
        %v1142 = vpack.c.bf16 %v1109, %v1109
        %1143 = vst [vmem:[%s292] sm:$0xf] %v1111
        %1144 = vst [vmem:[%s292 + $0x4] sm:$0xf] %v1112
        %1145 = vst [vmem:[%s292 + $0x8] sm:$0xf] %v1113
        %1146 = vst [vmem:[%s292 + $0xc] sm:$0xf] %v1114
        %1147 = vst [vmem:[%s292 + $0x10] sm:$0xf] %v1115
        %1148 = vst [vmem:[%s292 + $0x14] sm:$0xf] %v1116
        %1149 = vst [vmem:[%s292 + $0x18] sm:$0xf] %v1117
        %1150 = vst [vmem:[%s292 + $0x1c] sm:$0xf] %v1118
        %1151 = vst [vmem:[%s292 + $0x20] sm:$0xf] %v1119
        %1152 = vst [vmem:[%s292 + $0x24] sm:$0xf] %v1120
        %1153 = vst [vmem:[%s292 + $0x28] sm:$0xf] %v1121
        %1154 = vst [vmem:[%s292 + $0x2c] sm:$0xf] %v1122
        %1155 = vst [vmem:[%s292 + $0x30] sm:$0xf] %v1123
        %1156 = vst [vmem:[%s292 + $0x34] sm:$0xf] %v1124
        %1157 = vst [vmem:[%s292 + $0x38] sm:$0xf] %v1125
        %1158 = vst [vmem:[%s292 + $0x3c] sm:$0xf] %v1126
        %1159 = vst [vmem:[%s292 + $0x40] sm:$0xf] %v1127
        %1160 = vst [vmem:[%s292 + $0x44] sm:$0xf] %v1128
        %1161 = vst [vmem:[%s292 + $0x48] sm:$0xf] %v1129
        %1162 = vst [vmem:[%s292 + $0x4c] sm:$0xf] %v1130
        %1163 = vst [vmem:[%s292 + $0x50] sm:$0xf] %v1131
        %1164 = vst [vmem:[%s292 + $0x54] sm:$0xf] %v1132
        %1165 = vst [vmem:[%s292 + $0x58] sm:$0xf] %v1133
        %1166 = vst [vmem:[%s292 + $0x5c] sm:$0xf] %v1134
        %1167 = vst [vmem:[%s292 + $0x60] sm:$0xf] %v1135
        %1168 = vst [vmem:[%s292 + $0x64] sm:$0xf] %v1136
        %1169 = vst [vmem:[%s292 + $0x68] sm:$0xf] %v1137
        %1170 = vst [vmem:[%s292 + $0x6c] sm:$0xf] %v1138
        %1171 = vst [vmem:[%s292 + $0x70] sm:$0xf] %v1139
        %1172 = vst [vmem:[%s292 + $0x74] sm:$0xf] %v1140
        %1173 = vst [vmem:[%s292 + $0x78] sm:$0xf] %v1141
        %1174 = vst [vmem:[%s292 + $0x7c] sm:$0xf] %v1142
        %s1175 = sand.u32 %s142, 1
        %s1176 = scalar_lea.sflag [#allocation4], %s1175
        %s1177 = sand.u32 %s142, 1
        %s1178 = smul.addr %s1177, 128
        %s1179 = scalar_lea.vmem [#allocation10], %s1178
        // Predicated region
        $region57: #{tpu_custom_call.1} parent=39 // pred_check
          %p1180 = pneg %p152
        $region58: #{tpu_custom_call.1} parent=39 // pred_check_branch
          %1182 = sbr.rel (%p1180) target = $region60
        $region59: #{tpu_custom_call.1} parent=39 // pred_region
          %s1183 = smul.u32 32, %s24
          %1185 = vsyncadd %s1176, 0
          %s1186 = smul.addr %s1183, 4
          %s1187 = scalar_lea.hbm %s5, %s1186
          %s1188 = sshll.u32 %s1179, 4
          %s1189 = int_to_ptr.vmem [resolvable:$true] %s1188
          %s1190 = sshll.u32 %s1187, 4
          %s1191 = int_to_ptr.hbm [resolvable:$true] %s1190
          %1196 = dma.vmem_to_hbm [thread:$0]  %s1189, 2048, %s1191, %s1176, 64, 64, 4
        $region60: #{tpu_custom_call.1} parent=39 // pred_fallthru
          _
      $region40: #{tpu_custom_call.1} parent=5 // pred_fallthru
        _
      %p1197 = scmp.le.s32.totalorder 2, %s19
      // Predicated region
      $region61: #{tpu_custom_call.1} parent=5 // pred_check
        %p1198 = pneg %p1197
      $region62: #{tpu_custom_call.1} parent=5 // pred_check_branch
        %1200 = sbr.rel (%p1198) target = $region64
      $region63: #{tpu_custom_call.1} parent=5 // pred_region
        %s1201 = ssub.s32 %s19, 2
        // Predicated region
        $region65: #{tpu_custom_call.1} parent=63 // pred_check
          %p1202 = pneg %p158
        $region66: #{tpu_custom_call.1} parent=63 // pred_check_branch
          %1204 = sbr.rel (%p1202) target = $region68
        $region67: #{tpu_custom_call.1} parent=63 // pred_region
          %s1205 = sand.u32 %s143, 1
          %s1206 = scalar_lea.sflag [#allocation4], %s1205
          %s1207 = sand.u32 %s143, 1
          %s1208 = smul.addr %s1207, 128
          %s1209 = scalar_lea.vmem [#allocation10], %s1208
          %1211 = dma.done %s1206, 2048
        $region68: #{tpu_custom_call.1} parent=63 // pred_fallthru
          _
      $region64: #{tpu_custom_call.1} parent=5 // pred_fallthru
        _
    $region6: #{tpu_custom_call.1} parent=1 // loop_footer
      %s23 = sadd.s32 1, %s19
    $region7: #{tpu_custom_call.1} parent=1 // loop_footer_branch
      %18 = sbr.rel target = $region3
    $region8: #{tpu_custom_call.1} parent=1 // loop_exit
      _
    %1212 = vsyncpa [#allocation3], 1
    %s1213 = scalar_lea.sflag [#allocation3], 1
    %1214 = vsyncpa %s1213, 1
    %1215 = vsyncpa [#allocation6], 1
    %1216 = vsyncpa [#allocation9], 1
    %1217 = vsyncpa [#allocation4], 1
    %s1218 = scalar_lea.sflag [#allocation4], 1
    %1219 = vsyncpa %s1218, 1

</llo_original>
